<compile_context>
chip_gen: v6e
topology: v6e:2x2x1
jax: 0.10.0
libtpu: 0.0.40
codegen_flags: <defaults>
</compile_context>

<pallas_src>
import functools

import numpy as np
import jax
import jax.numpy as jnp
from jax import lax
from jax.experimental import pallas as pl
from jax.experimental.pallas import tpu as pltpu

# ---- module hyper-parameters (small, consistent with __init__) ----
EMB = 32          # embedding_dim
N_LAYERS = 2      # n_layers
N_HEADS = 4       # n_heads
N_Z = 8           # number of team skills
N_z = 6           # number of agent skills
N_AGENTS = 7      # agents in encoded_observations
MAX_LEN = 100
LN_EPS = 1e-5
CLIP = 50.0
HEAD_DIM = EMB // N_HEADS

T_PAD = 8                   # fixed decoder length (>= 1 + 1 + max agents decoded)
MEM_LEN = 1 + N_AGENTS      # memory length S (state + observations) = 8
N_PAD = 128                 # padded head width -> unmasked, lane-dense stores


# =============================== kernels ======================================
def make_decoder_kernel(B):
    """Whole decoder stack + head + clamp, one invocation, shape-stable."""
    E, H, hd, L, T, S = EMB, N_HEADS, HEAD_DIM, N_LAYERS, T_PAD, MEM_LEN

    def kernel(tlen_ref,                       # SMEM (1,) int32 (scalar prefetch)
               x_ref,                          # (B*T, E)   padded decoder input
               memkv_ref,                      # (L, B*S, 2E) cached memory K/V
               wqkv_sa_ref, bqkv_sa_ref,       # (L, E, 3E), (L, 1, 3E)
               wq_ca_ref, bq_ca_ref,           # (L, E, E),  (L, 1, E)
               wo_ref, bo_ref,                 # (L, 2, E, E), (L, 2, 1, E)
               wff1_ref, bff1_ref, wff2_ref, bff2_ref,
               lnw_ref, lnb_ref,               # (L, 3, 1, E)
               hw_ref, hb_ref,                 # (E, N_PAD), (1, N_PAD)
               out_ref):                       # (B*T, N_PAD)
        t_len = tlen_ref[0]
        x = x_ref[...]                         # (B*T, E)

        def layer_norm(y, w, b):
            # single-pass biased variance: E[y^2] - mean^2
            mu = jnp.mean(y, axis=-1, keepdims=True)
            ms = jnp.mean(y * y, axis=-1, keepdims=True)
            var = ms - mu * mu
            return (y - mu) * lax.rsqrt(var + LN_EPS) * w + b

        def head_block_mask(Skv):
            # (H*Skv, E) block-diagonal mask: 1 where key-row head == column head.
            j_head = lax.broadcasted_iota(jnp.int32, (H, Skv, H, hd), 0)
            e_head = lax.broadcasted_iota(jnp.int32, (H, Skv, H, hd), 2)
            return jnp.where(j_head == e_head, 1.0, 0.0).reshape(H * Skv, E)

        def attention(q2, k2, v2, Skv, wo, bo, mask_keys):
            # q2: (B*T, E); k2, v2: (B*Skv, E).  All heads at once via a
            # block-diagonal layout of K/V -> 2 batched matmuls + 1 output dot.
            q3 = q2.reshape(B, T, E)
            k3 = k2.reshape(B, Skv, E)
            v3 = v2.reshape(B, Skv, E)
            blk = head_block_mask(Skv)                                  # (H*Skv, E)
            k_blk = jnp.broadcast_to(k3[:, None, :, :],
                                     (B, H, Skv, E)).reshape(B, H * Skv, E) * blk
            v_blk = jnp.broadcast_to(v3[:, None, :, :],
                                     (B, H, Skv, E)).reshape(B, H * Skv, E) * blk

            s = jnp.einsum('bte,bje->btj', q3, k_blk,
                           preferred_element_type=jnp.float32)          # (B,T,H*Skv)
            s4 = s.reshape(B, T, H, Skv)
            if mask_keys:   # mask padded decoder tokens (keys >= true length)
                kidx = lax.broadcasted_iota(jnp.int32, (B, T, H, Skv), 3)
                s4 = jnp.where(kidx < t_len, s4, -1e30)
            m = jnp.max(s4, axis=-1, keepdims=True)
            e = jnp.exp(s4 - m)
            p4 = e * pl.reciprocal(jnp.sum(e, axis=-1, keepdims=True), approx=True)
            p = p4.reshape(B, T, H * Skv)

            o3 = jnp.einsum('btj,bje->bte', p, v_blk,
                            preferred_element_type=jnp.float32)         # (B,T,E)
            o2 = o3.reshape(B * T, E)
            return jnp.dot(o2, wo, preferred_element_type=jnp.float32) + bo

        # static layer loop; stacked weights indexed with compile-time ints.
        for l in range(L):
            # --- self-attention (packed QKV; 1/sqrt(hd) folded into q cols) ---
            qkv = jnp.dot(x, wqkv_sa_ref[l],
                          preferred_element_type=jnp.float32) + bqkv_sa_ref[l]
            sa = attention(qkv[:, :E], qkv[:, E:2 * E], qkv[:, 2 * E:], T,
                           wo_ref[l, 0], bo_ref[l, 0], mask_keys=True)
            x = layer_norm(x + sa, lnw_ref[l, 0], lnb_ref[l, 0])

            # --- cross-attention (Q-only projection; memory K/V precomputed) ---
            q = jnp.dot(x, wq_ca_ref[l],
                        preferred_element_type=jnp.float32) + bq_ca_ref[l]
            memkv = memkv_ref[l]                                        # (B*S, 2E)
            ca = attention(q, memkv[:, :E], memkv[:, E:], S,
                           wo_ref[l, 1], bo_ref[l, 1], mask_keys=False)
            x = layer_norm(x + ca, lnw_ref[l, 1], lnb_ref[l, 1])

            # --- feed-forward (relu) ---
            h1 = jnp.maximum(
                jnp.dot(x, wff1_ref[l], preferred_element_type=jnp.float32)
                + bff1_ref[l], 0.0)
            ff = jnp.dot(h1, wff2_ref[l],
                         preferred_element_type=jnp.float32) + bff2_ref[l]
            x = layer_norm(x + ff, lnw_ref[l, 2], lnb_ref[l, 2])

        # head on all rows (lane-dense (B*T, 128) store); valid row is gathered
        # by the wrapper, so the kernel needs no dynamic row index at all.
        logits = jnp.dot(x, hw_ref[...],
                         preferred_element_type=jnp.float32) + hb_ref[...]
        out_ref[...] = jnp.clip(logits, -CLIP, CLIP)   # torch.clamp(logits, -50, 50)

    return kernel


def make_memkv_kernel():
    """Per-episode cross-attention K/V cache: memkv[l] = mem @ Wkv[l] + bkv[l]."""
    def kernel(mem_ref, wkv_ref, bkv_ref, out_ref):
        mem = mem_ref[...]                                   # (B*S, E)
        for l in range(N_LAYERS):
            out_ref[l] = (jnp.dot(mem, wkv_ref[l],
                                  preferred_element_type=jnp.float32)
                          + bkv_ref[l])
    return kernel


# ------------------------- cached pallas callables ---------------------------
_VMEM = lambda: pl.BlockSpec(memory_space=pltpu.MemorySpace.VMEM)


@functools.lru_cache(maxsize=None)
def _get_decoder_fn(B):
    # Built ONCE per batch size; jax.jit caches the single compiled executable
    # shared by every decode step and by both (team / agent) head paths.
    fn = pl.pallas_call(
        make_decoder_kernel(B),
        grid_spec=pltpu.PrefetchScalarGridSpec(
            num_scalar_prefetch=1,              # true length -> SMEM scalar
            grid=(1,),
            in_specs=[_VMEM() for _ in range(16)],
            out_specs=_VMEM()),
        out_shape=jax.ShapeDtypeStruct((B * T_PAD, N_PAD), jnp.float32),
        compiler_params=pltpu.CompilerParams(
            dimension_semantics=("arbitrary",)),
    )
    return jax.jit(fn)


@functools.lru_cache(maxsize=None)
def _get_memkv_fn(B):
    fn = pl.pallas_call(
        make_memkv_kernel(),
        in_specs=[_VMEM() for _ in range(3)],
        out_specs=_VMEM(),
        out_shape=jax.ShapeDtypeStruct((N_LAYERS, B * MEM_LEN, 2 * EMB),
                                       jnp.float32),
    )
    return jax.jit(fn)


# ------------------------- parameters / packing -------------------------------
def make_positional_encoding(d_model, max_len=MAX_LEN):
    position = np.arange(max_len, dtype=np.float32)[:, None]
    div_term = np.exp(np.arange(0, d_model, 2, dtype=np.float32)
                      * (-np.log(10000.0) / d_model))
    pe = np.zeros((max_len, d_model), np.float32)
    pe[:, 0::2] = np.sin(position * div_term)
    pe[:, 1::2] = np.cos(position * div_term)
    return jnp.asarray(pe)


def init_params(key):
    def nrm(k, shape, scale=0.05):
        return (scale * jax.random.normal(k, shape)).astype(jnp.float32)

    keys = iter(jax.random.split(key, 512))
    params = {
        "Z0_emb": nrm(next(keys), (1, EMB)),
        "team_emb": nrm(next(keys), (N_Z, EMB)),
        "agent_emb": nrm(next(keys), (N_z, EMB)),
        "pe": make_positional_encoding(EMB),
        "team_head_w": nrm(next(keys), (EMB, N_Z)),
        "team_head_b": nrm(next(keys), (1, N_Z)),
        "agent_head_w": nrm(next(keys), (EMB, N_z)),
        "agent_head_b": nrm(next(keys), (1, N_z)),
        "layers": [],
    }
    ffd = 4 * EMB
    for _ in range(N_LAYERS):
        lp = {}
        for prefix in ("sa", "ca"):
            lp[f"{prefix}_wq"] = nrm(next(keys), (EMB, EMB))
            lp[f"{prefix}_wk"] = nrm(next(keys), (EMB, EMB))
            lp[f"{prefix}_wv"] = nrm(next(keys), (EMB, EMB))
            lp[f"{prefix}_bq"] = nrm(next(keys), (1, EMB))
            lp[f"{prefix}_bk"] = nrm(next(keys), (1, EMB))
            lp[f"{prefix}_bv"] = nrm(next(keys), (1, EMB))
            lp[f"{prefix}_wo"] = nrm(next(keys), (EMB, EMB))
            lp[f"{prefix}_bo"] = nrm(next(keys), (1, EMB))
        lp["ff_w1"] = nrm(next(keys), (EMB, ffd))
        lp["ff_b1"] = nrm(next(keys), (1, ffd))
        lp["ff_w2"] = nrm(next(keys), (ffd, EMB))
        lp["ff_b2"] = nrm(next(keys), (1, EMB))
        for i in (1, 2, 3):
            lp[f"ln{i}_w"] = jnp.ones((1, EMB), jnp.float32)
            lp[f"ln{i}_b"] = jnp.zeros((1, EMB), jnp.float32)
        params["layers"].append(lp)
    return params


def pack_params(params):
    """Stack per-layer weights; pack self-attn QKV and cross-attn KV; fold the
    1/sqrt(head_dim) softmax scale into the q weights/bias; pad heads to 128."""
    scale = 1.0 / float(HEAD_DIM) ** 0.5
    wqkv_sa, bqkv_sa = [], []
    wq_ca, bq_ca, wkv_ca, bkv_ca = [], [], [], []
    wo, bo, wff1, bff1, wff2, bff2, lnw, lnb = [], [], [], [], [], [], [], []
    for lp in params["layers"]:
        wqkv_sa.append(jnp.concatenate(
            [lp["sa_wq"] * scale, lp["sa_wk"], lp["sa_wv"]], axis=1))
        bqkv_sa.append(jnp.concatenate(
            [lp["sa_bq"] * scale, lp["sa_bk"], lp["sa_bv"]], axis=1))
        wq_ca.append(lp["ca_wq"] * scale)
        bq_ca.append(lp["ca_bq"] * scale)
        wkv_ca.append(jnp.concatenate([lp["ca_wk"], lp["ca_wv"]], axis=1))
        bkv_ca.append(jnp.concatenate([lp["ca_bk"], lp["ca_bv"]], axis=1))
        wo.append(jnp.stack([lp["sa_wo"], lp["ca_wo"]]))
        bo.append(jnp.stack([lp["sa_bo"], lp["ca_bo"]]))
        wff1.append(lp["ff_w1"]); bff1.append(lp["ff_b1"])
        wff2.append(lp["ff_w2"]); bff2.append(lp["ff_b2"])
        lnw.append(jnp.stack([lp["ln1_w"], lp["ln2_w"], lp["ln3_w"]]))
        lnb.append(jnp.stack([lp["ln1_b"], lp["ln2_b"], lp["ln3_b"]]))

    def pad_head(w, b):
        wp = jnp.zeros((EMB, N_PAD), jnp.float32).at[:, :w.shape[1]].set(w)
        bp = jnp.zeros((1, N_PAD), jnp.float32).at[:, :b.shape[1]].set(b)
        return wp, bp

    team_w, team_b = pad_head(params["team_head_w"], params["team_head_b"])
    agent_w, agent_b = pad_head(params["agent_head_w"], params["agent_head_b"])
    return {
        "wqkv_sa": jnp.stack(wqkv_sa), "bqkv_sa": jnp.stack(bqkv_sa),   # (L,E,3E),(L,1,3E)
        "wq_ca": jnp.stack(wq_ca), "bq_ca": jnp.stack(bq_ca),           # (L,E,E),(L,1,E)
        "wkv_ca": jnp.stack(wkv_ca), "bkv_ca": jnp.stack(bkv_ca),       # (L,E,2E),(L,1,2E)
        "wo": jnp.stack(wo), "bo": jnp.stack(bo),                       # (L,2,E,E),(L,2,1,E)
        "wff1": jnp.stack(wff1), "bff1": jnp.stack(bff1),
        "wff2": jnp.stack(wff2), "bff2": jnp.stack(bff2),
        "lnw": jnp.stack(lnw), "lnb": jnp.stack(lnb),                   # (L,3,1,E)
        "team_head_w": team_w, "team_head_b": team_b,                   # (E,128),(1,128)
        "agent_head_w": agent_w, "agent_head_b": agent_b,
    }


# ------------------------------ forward glue ----------------------------------
def precompute_memory_kv(packed, encoded_state, encoded_observations):
    """Memory is constant across decode steps -> project its K/V once per episode."""
    B = encoded_state.shape[0]
    memory = jnp.concatenate([encoded_state, encoded_observations],
                             axis=1).astype(jnp.float32)            # (B, S, E)
    mem2d = memory.reshape(B * MEM_LEN, EMB)                         # fold in wrapper
    return _get_memkv_fn(B)(mem2d, packed["wkv_ca"], packed["bkv_ca"])


def skill_decoder_forward(params, packed, encoded_state, encoded_observations,
                          Z=None, z=None, step=0, mem_kv=None):
    """Mirrors SkillDecoder.forward (eval semantics, no host-side logging)."""
    # TODO(synk): the reference's host-side main_logger debug / NaN-Inf
    # diagnostics are debug-only and intentionally omitted; the +/-50 clamp
    # is applied in-kernel.
    B = encoded_state.shape[0]
    if mem_kv is None:
        mem_kv = precompute_memory_kv(packed, encoded_state, encoded_observations)

    # decoder input tokens (cheap JAX glue), then PE, zero-pad to T_PAD, fold batch
    z0 = jnp.broadcast_to(params["Z0_emb"][0][None, None, :], (B, 1, EMB))
    if step == 0:
        toks = [z0]
    else:
        toks = [z0, params["team_emb"][Z][:, None, :]]
        for i in range(step - 1):
            toks.append(params["agent_emb"][z[:, i]][:, None, :])
    dec = jnp.concatenate(toks, axis=1).astype(jnp.float32)
    T = dec.shape[1]
    assert T <= T_PAD
    dec = dec + params["pe"][:T][None, :, :]
    dec = jnp.pad(dec, ((0, 0), (0, T_PAD - T), (0, 0)))            # (B, T_PAD, E)
    x2d = dec.reshape(B * T_PAD, EMB)                               # fold in wrapper

    if step == 0:
        hw, hb, n_out = packed["team_head_w"], packed["team_head_b"], N_Z
    else:
        hw, hb, n_out = packed["agent_head_w"], packed["agent_head_b"], N_z

    t_len = jnp.array([T], dtype=jnp.int32)
    logits_all = _get_decoder_fn(B)(
        t_len, x2d, mem_kv,
        packed["wqkv_sa"], packed["bqkv_sa"],
        packed["wq_ca"], packed["bq_ca"],
        packed["wo"], packed["bo"],
        packed["wff1"], packed["bff1"], packed["wff2"], packed["bff2"],
        packed["lnw"], packed["lnb"], hw, hb)                       # (B*T_PAD, 128)

    rows = jnp.arange(B) * T_PAD + (T - 1)         # last valid token of each batch
    return logits_all[rows, :n_out]                                 # (B, n_out)


# ------------------------------------ main ------------------------------------
if __name__ == "__main__":
    key = jax.random.PRNGKey(0)
    kp, k1, k2 = jax.random.split(key, 3)
    params = init_params(kp)
    packed = pack_params(params)

    B = 2
    encoded_state = jax.random.normal(k1, (B, 1, EMB), jnp.float32)
    encoded_observations = jax.random.normal(k2, (B, N_AGENTS, EMB), jnp.float32)
    Z = jnp.array([1, 3], dtype=jnp.int32)
    z = jnp.array([[0, 2, 4], [1, 3, 5]], dtype=jnp.int32)          # (B, step)

    # per-episode cross-attention K/V cache (memory constant across steps)
    mem_kv = jax.block_until_ready(
        precompute_memory_kv(packed, encoded_state, encoded_observations))

    # step == 0 path: team-skill logits (B, n_Z)
    team_logits = skill_decoder_forward(params, packed, encoded_state,
                                        encoded_observations, step=0,
                                        mem_kv=mem_kv)
    team_logits = jax.block_until_ready(team_logits)
    assert team_logits.shape == (B, N_Z)
    assert bool(jnp.all(jnp.isfinite(team_logits)))
    assert bool(jnp.all(jnp.abs(team_logits) <= CLIP))

    # step > 0 path: agent-skill logits (B, n_z) -- same compiled kernel
    agent_logits = skill_decoder_forward(params, packed, encoded_state,
                                         encoded_observations, Z=Z, z=z, step=3,
                                         mem_kv=mem_kv)
    agent_logits = jax.block_until_ready(agent_logits)
    assert agent_logits.shape == (B, N_z)
    assert bool(jnp.all(jnp.isfinite(agent_logits)))
    assert bool(jnp.all(jnp.abs(agent_logits) <= CLIP))

    print("KERNEL_OK")
</pallas_src>

<mosaic_0001>
module attributes {stable_mosaic.version = 11 : i64} {
  func.func @kernel(%arg0: memref<16x32xf32, #tpu.memory_space<vmem>>, %arg1: memref<2x32x64xf32, #tpu.memory_space<vmem>>, %arg2: memref<2x1x64xf32, #tpu.memory_space<vmem>>, %arg3: memref<2x16x64xf32, #tpu.memory_space<vmem>>) attributes {dimension_semantics = [], scalar_prefetch = 0 : i64, scratch_operands = 0 : i64, tpu.core_type = #tpu.core_type<tc>} {
    %c0 = arith.constant 0 : index
    %c0_0 = arith.constant 0 : index
    %0 = vector.load %arg0[%c0, %c0_0] : memref<16x32xf32, #tpu.memory_space<vmem>>, vector<16x32xf32>
    %c0_1 = arith.constant 0 : index
    %c0_2 = arith.constant 0 : index
    %c0_3 = arith.constant 0 : index
    %1 = vector.load %arg1[%c0_1, %c0_2, %c0_3] : memref<2x32x64xf32, #tpu.memory_space<vmem>>, vector<1x32x64xf32>
    %2 = vector.shape_cast %1 : vector<1x32x64xf32> to vector<32x64xf32>
    %cst = arith.constant dense<0.000000e+00> : vector<16x64xf32>
    %3 = tpu.matmul %0, %2, %cst {dimension_numbers = #tpu.dot_dimension_numbers<[1], [0], [0], [1], [0, 0, 1, 1], [], []>} : vector<16x32xf32>, vector<32x64xf32>, vector<16x64xf32> -> vector<16x64xf32>
    %c0_4 = arith.constant 0 : index
    %c0_5 = arith.constant 0 : index
    %c0_6 = arith.constant 0 : index
    %4 = vector.load %arg2[%c0_4, %c0_5, %c0_6] : memref<2x1x64xf32, #tpu.memory_space<vmem>>, vector<1x1x64xf32>
    %5 = vector.shape_cast %4 : vector<1x1x64xf32> to vector<1x64xf32>
    %6 = vector.broadcast %5 : vector<1x64xf32> to vector<16x64xf32>
    %7 = arith.addf %3, %6 : vector<16x64xf32>
    %c0_7 = arith.constant 0 : index
    %c0_8 = arith.constant 0 : index
    %c0_9 = arith.constant 0 : index
    %8 = vector.load %arg3[%c0_7, %c0_8, %c0_9] : memref<2x16x64xf32, #tpu.memory_space<vmem>>, vector<1x16x64xf32>
    %9 = vector.shape_cast %8 : vector<1x16x64xf32> to vector<16x64xf32>
    %10 = vector.shape_cast %7 : vector<16x64xf32> to vector<1x16x64xf32>
    tpu.vector_store %arg3[%c0_7, %c0_8, %c0_9], %10 {strides = array<i32>} : memref<2x16x64xf32, #tpu.memory_space<vmem>>, vector<1x16x64xf32>,
    %c1 = arith.constant 1 : index
    %c0_10 = arith.constant 0 : index
    %c0_11 = arith.constant 0 : index
    %11 = vector.load %arg1[%c1, %c0_10, %c0_11] : memref<2x32x64xf32, #tpu.memory_space<vmem>>, vector<1x32x64xf32>
    %12 = vector.shape_cast %11 : vector<1x32x64xf32> to vector<32x64xf32>
    %cst_12 = arith.constant dense<0.000000e+00> : vector<16x64xf32>
    %13 = tpu.matmul %0, %12, %cst_12 {dimension_numbers = #tpu.dot_dimension_numbers<[1], [0], [0], [1], [0, 0, 1, 1], [], []>} : vector<16x32xf32>, vector<32x64xf32>, vector<16x64xf32> -> vector<16x64xf32>
    %c1_13 = arith.constant 1 : index
    %c0_14 = arith.constant 0 : index
    %c0_15 = arith.constant 0 : index
    %14 = vector.load %arg2[%c1_13, %c0_14, %c0_15] : memref<2x1x64xf32, #tpu.memory_space<vmem>>, vector<1x1x64xf32>
    %15 = vector.shape_cast %14 : vector<1x1x64xf32> to vector<1x64xf32>
    %16 = vector.broadcast %15 : vector<1x64xf32> to vector<16x64xf32>
    %17 = arith.addf %13, %16 : vector<16x64xf32>
    %c1_16 = arith.constant 1 : index
    %c0_17 = arith.constant 0 : index
    %c0_18 = arith.constant 0 : index
    %18 = vector.load %arg3[%c1_16, %c0_17, %c0_18] : memref<2x16x64xf32, #tpu.memory_space<vmem>>, vector<1x16x64xf32>
    %19 = vector.shape_cast %18 : vector<1x16x64xf32> to vector<16x64xf32>
    %20 = vector.shape_cast %17 : vector<16x64xf32> to vector<1x16x64xf32>
    tpu.vector_store %arg3[%c1_16, %c0_17, %c0_18], %20 {strides = array<i32>} : memref<2x16x64xf32, #tpu.memory_space<vmem>>, vector<1x16x64xf32>,
    return
  }
}

</mosaic_0001>

<llo_original>
// kernel: tpu_custom_call.1
$region0: #{tpu_custom_call.1}
  #allocation0 [shape = 'u32[]', space=smem, size = 0x4, offset = 0x4, fixed_abs, tag = 'smem constant byte address 0x4 - core index']
  #allocation1 [shape = 'u32[144,128]{1,0:T(1,128)}', space=vmem, size = 0x12000, scoped, tag = 'internal scratch']
  %s0 = inlined_call_operand.hbm [shape: f32[16,32], index: 0, kind: input, shape index: {}]
  %s1 = inlined_call_operand.hbm [shape: f32[2,32,64], index: 1, kind: input, shape index: {}]
  %s2 = inlined_call_operand.vmem [shape: f32[2,1,64], index: 2, kind: input, shape index: {}]
  %s3 = inlined_call_operand.hbm [shape: f32[2,16,64], index: 3, kind: output, shape index: {}]
  %s4 = sld [smem:[#allocation0]]
  $region30: #{tpu_custom_call.1} parent=0
    _
  %s6 = ssub.s32 1, %s4
  %s7 = scalar_select 0, %s6, %s4
  $region1: #{tpu_custom_call.1} parent=0
    #allocation2 [shape = 'u8[8192]{0}', space=vmem, size = 0x2000, scoped, tag = 'input window, operand 0, single buffered']
    #allocation3 [shape = 's32[1]{0}', space=sflag, size = 0x4, scoped, tag = 'scoped memory for tpu_custom_call.1']
    #allocation4 [shape = 's32[1]{0}', space=sflag, size = 0x4, scoped, tag = 'scoped memory for tpu_custom_call.1']
    #allocation5 [shape = 'u8[32768]{0}', space=vmem, size = 0x8000, scoped, tag = 'input window, operand 1, single buffered']
    #allocation6 [shape = 's32[1]{0}', space=sflag, size = 0x4, scoped, tag = 'scoped memory for tpu_custom_call.1']
    #allocation7 [shape = 'u8[16384]{0}', space=vmem, size = 0x4000, scoped, tag = 'output window, operand 0, single buffered']
    %8 = vsyncpa [#allocation3], 0
    %9 = vsyncpa [#allocation6], 0
    %10 = vsyncpa [#allocation4], 0
    // Predicated region
    $region2: #{tpu_custom_call.1} parent=1 // pred_check
      _
    $region3: #{tpu_custom_call.1} parent=1 // pred_check_branch
      %12 = sbr.rel (0) target = $region5
    $region4: #{tpu_custom_call.1} parent=1 // pred_region
      %s14 = ssub.s32 256, 256
      %15 = vsyncadd [#allocation3], %s14
      %s16 = sshll.u32 [#allocation2], 4
      %s17 = int_to_ptr.vmem [resolvable:$true] %s16
      %22 = dma.hbm_to_vmem [thread:$0]  %s0, 256, %s17, [#allocation3], 128, 128, 8
    $region5: #{tpu_custom_call.1} parent=1 // pred_fallthru
      _
    // Predicated region
    $region6: #{tpu_custom_call.1} parent=1 // pred_check
      _
    $region7: #{tpu_custom_call.1} parent=1 // pred_check_branch
      %24 = sbr.rel (0) target = $region9
    $region8: #{tpu_custom_call.1} parent=1 // pred_region
      %s26 = ssub.s32 1024, 1024
      %27 = vsyncadd [#allocation6], %s26
      %s28 = sshll.u32 [#allocation5], 4
      %s29 = int_to_ptr.vmem [resolvable:$true] %s28
      %34 = dma.hbm_to_vmem [thread:$0]  %s1, 1024, %s29, [#allocation6], 128, 128, 8
    $region9: #{tpu_custom_call.1} parent=1 // pred_fallthru
      _
    // Predicated region
    $region10: #{tpu_custom_call.1} parent=1 // pred_check
      _
    $region11: #{tpu_custom_call.1} parent=1 // pred_check_branch
      %36 = sbr.rel (0) target = $region13
    $region12: #{tpu_custom_call.1} parent=1 // pred_region
      _
    $region13: #{tpu_custom_call.1} parent=1 // pred_fallthru
      _
    // Predicated region
    $region14: #{tpu_custom_call.1} parent=1 // pred_check
      _
    $region15: #{tpu_custom_call.1} parent=1 // pred_check_branch
      %38 = sbr.rel (0) target = $region17
    $region16: #{tpu_custom_call.1} parent=1 // pred_region
      %39 = dma.done [#allocation3], 256
    $region17: #{tpu_custom_call.1} parent=1 // pred_fallthru
      _
    // Predicated region
    $region18: #{tpu_custom_call.1} parent=1 // pred_check
      _
    $region19: #{tpu_custom_call.1} parent=1 // pred_check_branch
      %41 = sbr.rel (0) target = $region21
    $region20: #{tpu_custom_call.1} parent=1 // pred_region
      %42 = dma.done [#allocation6], 1024
    $region21: #{tpu_custom_call.1} parent=1 // pred_fallthru
      _
    %v43 = vld [vmem:[#allocation2] sm:$0xff]
    %v44 = vld [vmem:[#allocation2 + $0x8] sm:$0xff]
    %v45 = vld [vmem:[#allocation5] sm:$0xff]
    %v46 = vld [vmem:[#allocation5 + $0x8] sm:$0xff]
    %v47 = vld [vmem:[#allocation5 + $0x10] sm:$0xff]
    %v48 = vld [vmem:[#allocation5 + $0x18] sm:$0xff]
    %v49 = vld [vmem:[%s2] sm:$0x1]
    %v51 = vlaneseq
    %v52 = vshrl.u32 %v51, 7
    %v53 = vsub.s32 0, %v52
    %v54 = vrot.slane %v49, %v53
    %vm56 = vcmask 261120
    %v58 = vsel %vm56, %v43, 0
    %v61 = vsel %vm56, %v44, 0
    %63 = vmatprep.subr.mxu0 0.0
    %64 = vmatpush1.msra.mxu0 0.0
    %65 = vmatprep.subr.mxu0 0.0
    %66 = vmatpush1.msra.mxu0 0.0
    %67 = vmatprep.subr.mxu0 0.0
    %68 = vmatpush1.msra.mxu0 0.0
    %69 = vmatprep.subr.mxu0 0.0
    %70 = vmatpush1.msra.mxu0 0.0
    %71 = vmatprep.subr.mxu0 0.0
    %72 = vmatpush1.msra.mxu0 0.0
    %73 = vmatprep.subr.mxu0 0.0
    %74 = vmatpush1.msra.mxu0 0.0
    %75 = vmatprep.subr.mxu0 0.0
    %76 = vmatpush1.msra.mxu0 0.0
    %77 = vmatprep.subr.mxu0 0.0
    %78 = vmatpush1.msra.mxu0 0.0
    %79 = vmatprep.subr.mxu0 0.0
    %80 = vmatpush1.msra.mxu0 0.0
    %81 = vmatprep.subr.mxu0 0.0
    %82 = vmatpush1.msra.mxu0 0.0
    %83 = vmatprep.subr.mxu0 0.0
    %84 = vmatpush1.msra.mxu0 0.0
    %85 = vmatprep.subr.mxu0 0.0
    %86 = vmatpush1.msra.mxu0 0.0
    %87 = vmatprep.subr.mxu0 0.0
    %88 = vmatpush1.msra.mxu0 %v48
    %89 = vmatprep.subr.mxu0 0.0
    %90 = vmatpush1.msra.mxu0 %v47
    %91 = vmatprep.subr.mxu0 0.0
    %92 = vmatpush1.msra.mxu0 %v46
    %93 = vmatprep.subr.mxu0 0.0
    %94 = vmatpush1.msra.mxu0 %v45
    %95 = vmatprep.subr.mxu0 0.0
    %96 = vmatpush2.msra.mxu0 0.0
    %97 = vmatprep.subr.mxu0 0.0
    %98 = vmatpush2.msra.mxu0 0.0
    %99 = vmatprep.subr.mxu0 0.0
    %100 = vmatpush2.msra.mxu0 0.0
    %101 = vmatprep.subr.mxu0 0.0
    %102 = vmatpush2.msra.mxu0 0.0
    %103 = vmatprep.subr.mxu0 0.0
    %104 = vmatpush2.msra.mxu0 0.0
    %105 = vmatprep.subr.mxu0 0.0
    %106 = vmatpush2.msra.mxu0 0.0
    %107 = vmatprep.subr.mxu0 0.0
    %108 = vmatpush2.msra.mxu0 0.0
    %109 = vmatprep.subr.mxu0 0.0
    %110 = vmatpush2.msra.mxu0 0.0
    %111 = vmatprep.subr.mxu0 0.0
    %112 = vmatpush2.msra.mxu0 0.0
    %113 = vmatprep.subr.mxu0 0.0
    %114 = vmatpush2.msra.mxu0 0.0
    %115 = vmatprep.subr.mxu0 0.0
    %116 = vmatpush2.msra.mxu0 0.0
    %117 = vmatprep.subr.mxu0 0.0
    %118 = vmatpush2.msra.mxu0 0.0
    %119 = vmatprep.subr.mxu0 0.0
    %120 = vmatpush2.msra.mxu0 0.0
    %121 = vmatprep.subr.mxu0 0.0
    %122 = vmatpush2.msra.mxu0 0.0
    %123 = vmatprep.subr.mxu0 0.0
    %124 = vmatpush2.msra.mxu0 0.0
    %125 = vmatprep.subr.mxu0 0.0
    %126 = vmatpush2.msra.mxu0 0.0
    %127 = vmatprep.mubr.f32.mxu0 0.0
    %128 = vmatmul.mubr.f32.gmra.mxu0 %v58
    %v129 = vpop.f32.mrf.mxu0
    %v130 = vadd.f32 %v54, %v129
    %v131 = vpop.f32.mrf.mxu0
    %132 = vmatprep.mubr.f32.mxu0 0.0
    %133 = vmatmul.mubr.f32.gmra.mxu0 %v61
    %v134 = vpop.f32.mrf.mxu0
    %v135 = vadd.f32 %v54, %v134
    %v136 = vpop.f32.mrf.mxu0
    %137 = vdwg.mxu0
    %vm138 = vcmask 523264
    %139 = vst.msk [vmem:[#allocation7] sm:$0xff] %vm138, %v130
    %140 = vst.msk [vmem:[#allocation7 + $0x8] sm:$0xff] %vm138, %v135
    %s141 = scalar_lea.vmem [#allocation5], 32
    %v142 = vld [vmem:[%s141] sm:$0xff]
    %v143 = vld [vmem:[%s141 + $0x8] sm:$0xff]
    %v144 = vld [vmem:[%s141 + $0x10] sm:$0xff]
    %v145 = vld [vmem:[%s141 + $0x18] sm:$0xff]
    %s146 = scalar_lea.vmem %s2, 1
    %v147 = vld [vmem:[%s146] sm:$0x1]
    %v149 = vlaneseq
    %v150 = vshrl.u32 %v149, 7
    %v151 = vsub.s32 0, %v150
    %v152 = vrot.slane %v147, %v151
    %154 = vmatprep.subr.mxu0 0.0
    %155 = vmatpush1.msra.mxu0 0.0
    %156 = vmatprep.subr.mxu0 0.0
    %157 = vmatpush1.msra.mxu0 0.0
    %158 = vmatprep.subr.mxu0 0.0
    %159 = vmatpush1.msra.mxu0 0.0
    %160 = vmatprep.subr.mxu0 0.0
    %161 = vmatpush1.msra.mxu0 0.0
    %162 = vmatprep.subr.mxu0 0.0
    %163 = vmatpush1.msra.mxu0 0.0
    %164 = vmatprep.subr.mxu0 0.0
    %165 = vmatpush1.msra.mxu0 0.0
    %166 = vmatprep.subr.mxu0 0.0
    %167 = vmatpush1.msra.mxu0 0.0
    %168 = vmatprep.subr.mxu0 0.0
    %169 = vmatpush1.msra.mxu0 0.0
    %170 = vmatprep.subr.mxu0 0.0
    %171 = vmatpush1.msra.mxu0 0.0
    %172 = vmatprep.subr.mxu0 0.0
    %173 = vmatpush1.msra.mxu0 0.0
    %174 = vmatprep.subr.mxu0 0.0
    %175 = vmatpush1.msra.mxu0 0.0
    %176 = vmatprep.subr.mxu0 0.0
    %177 = vmatpush1.msra.mxu0 0.0
    %178 = vmatprep.subr.mxu0 0.0
    %179 = vmatpush1.msra.mxu0 %v145
    %180 = vmatprep.subr.mxu0 0.0
    %181 = vmatpush1.msra.mxu0 %v144
    %182 = vmatprep.subr.mxu0 0.0
    %183 = vmatpush1.msra.mxu0 %v143
    %184 = vmatprep.subr.mxu0 0.0
    %185 = vmatpush1.msra.mxu0 %v142
    %186 = vmatprep.subr.mxu0 0.0
    %187 = vmatpush2.msra.mxu0 0.0
    %188 = vmatprep.subr.mxu0 0.0
    %189 = vmatpush2.msra.mxu0 0.0
    %190 = vmatprep.subr.mxu0 0.0
    %191 = vmatpush2.msra.mxu0 0.0
    %192 = vmatprep.subr.mxu0 0.0
    %193 = vmatpush2.msra.mxu0 0.0
    %194 = vmatprep.subr.mxu0 0.0
    %195 = vmatpush2.msra.mxu0 0.0
    %196 = vmatprep.subr.mxu0 0.0
    %197 = vmatpush2.msra.mxu0 0.0
    %198 = vmatprep.subr.mxu0 0.0
    %199 = vmatpush2.msra.mxu0 0.0
    %200 = vmatprep.subr.mxu0 0.0
    %201 = vmatpush2.msra.mxu0 0.0
    %202 = vmatprep.subr.mxu0 0.0
    %203 = vmatpush2.msra.mxu0 0.0
    %204 = vmatprep.subr.mxu0 0.0
    %205 = vmatpush2.msra.mxu0 0.0
    %206 = vmatprep.subr.mxu0 0.0
    %207 = vmatpush2.msra.mxu0 0.0
    %208 = vmatprep.subr.mxu0 0.0
    %209 = vmatpush2.msra.mxu0 0.0
    %210 = vmatprep.subr.mxu0 0.0
    %211 = vmatpush2.msra.mxu0 0.0
    %212 = vmatprep.subr.mxu0 0.0
    %213 = vmatpush2.msra.mxu0 0.0
    %214 = vmatprep.subr.mxu0 0.0
    %215 = vmatpush2.msra.mxu0 0.0
    %216 = vmatprep.subr.mxu0 0.0
    %217 = vmatpush2.msra.mxu0 0.0
    %218 = vmatprep.mubr.f32.mxu0 0.0
    %219 = vmatmul.mubr.f32.gmra.mxu0 %v58
    %v220 = vpop.f32.mrf.mxu0
    %v221 = vadd.f32 %v152, %v220
    %v222 = vpop.f32.mrf.mxu0
    %223 = vmatprep.mubr.f32.mxu0 0.0
    %224 = vmatmul.mubr.f32.gmra.mxu0 %v61
    %v225 = vpop.f32.mrf.mxu0
    %v226 = vadd.f32 %v152, %v225
    %v227 = vpop.f32.mrf.mxu0
    %228 = vdwg.mxu0
    %s229 = scalar_lea.vmem [#allocation7], 16
    %230 = vst.msk [vmem:[%s229] sm:$0xff] %vm138, %v221
    %231 = vst.msk [vmem:[%s229 + $0x8] sm:$0xff] %vm138, %v226
    // Predicated region
    $region22: #{tpu_custom_call.1} parent=1 // pred_check
      _
    $region23: #{tpu_custom_call.1} parent=1 // pred_check_branch
      %233 = sbr.rel (0) target = $region25
    $region24: #{tpu_custom_call.1} parent=1 // pred_region
      %s235 = ssub.s32 512, 512
      %236 = vsyncadd [#allocation4], %s235
      %s237 = sshll.u32 [#allocation7], 4
      %s238 = int_to_ptr.vmem [resolvable:$true] %s237
      %243 = dma.vmem_to_hbm [thread:$0]  %s238, 512, %s3, [#allocation4], 128, 128, 8
    $region25: #{tpu_custom_call.1} parent=1 // pred_fallthru
      _
    // Predicated region
    $region26: #{tpu_custom_call.1} parent=1 // pred_check
      _
    $region27: #{tpu_custom_call.1} parent=1 // pred_check_branch
      %245 = sbr.rel (0) target = $region29
    $region28: #{tpu_custom_call.1} parent=1 // pred_region
      %246 = dma.done [#allocation4], 512
    $region29: #{tpu_custom_call.1} parent=1 // pred_fallthru
      _
    %247 = vsyncpa [#allocation3], 1
    %248 = vsyncpa [#allocation6], 1
    %249 = vsyncpa [#allocation4], 1

</llo_original>
